<compile_context>
chip_gen: v7x
topology: tpu7x:2x2x1
jax: 0.10.0
libtpu: 0.0.40
codegen_flags: <defaults>
</compile_context>

<pallas_src>
import functools
import math

import jax
import jax.numpy as jnp
from jax import lax
from jax.experimental import pallas as pl
from jax.experimental.pallas import tpu as pltpu

M_MARGIN = 4
PI_CONST = 3.14159265  # same constant the PyTorch code uses

# k = floor(m * acos(c) / pi) via thresholds:  acos(c) >= j*pi/m  <=>  c <= cos(j*pi/m)
_K_THRESHOLDS = tuple(math.cos(j * PI_CONST / M_MARGIN) for j in range(1, M_MARGIN + 1))


def _round_up(v, m):
    return (v + m - 1) // m * m


def _pick_tile(size, unit, max_tile):
    """Pick a tile (multiple of `unit`, <= max_tile) and the padded extent it
    divides, keeping padded-compute waste small (no rounding up to a full
    max_tile when a smaller balanced tile covers the array)."""
    aligned = _round_up(size, unit)
    if aligned <= max_tile:
        return aligned, aligned
    n_tiles = -(-aligned // max_tile)
    tile = _round_up(-(-aligned // n_tiles), unit)
    return tile, tile * n_tiles


def _pad2(a, rows, cols):
    pr, pc = rows - a.shape[0], cols - a.shape[1]
    if pr == 0 and pc == 0:
        return a
    return jnp.pad(a, ((0, pr), (0, pc)))


def angle_linear_kernel(x_ref, w_ref, xlen_ref, cos_ref, phi_ref, acc_ref, wsq_ref):
    k_step = pl.program_id(2)

    @pl.when(k_step == 0)
    def _init():
        acc_ref[...] = jnp.zeros_like(acc_ref)
        wsq_ref[...] = jnp.zeros_like(wsq_ref)

    # Hot loop: MXU matmul (bf16 in, f32 acc) + per-column sum-of-squares of w
    # (VPU/XLU work that hides under the MXU).
    acc_ref[...] += jnp.dot(x_ref[...], w_ref[...],
                            preferred_element_type=jnp.float32)
    wf = w_ref[...].astype(jnp.float32)
    wsq_ref[...] += jnp.sum(wf * wf, axis=0, keepdims=True)

    @pl.when(k_step == pl.num_programs(2) - 1)
    def _epilogue():
        xlen = xlen_ref[...]                                   # (tm, 1) f32
        inv_xlen = jnp.where(xlen > 0.0, 1.0 / xlen, 0.0)      # once per tile
        wsq = wsq_ref[...]                                     # (1, tn) f32
        inv_wn = jnp.where(wsq > 0.0, lax.rsqrt(wsq), 0.0)     # EUP rsqrt

        # cos(theta): normalize via broadcast multiplies.
        c = jnp.clip(acc_ref[...] * inv_wn * inv_xlen, -1.0, 1.0)

        # cos(m*theta), m=4 Chebyshev (FMA form): 8c^4 - 8c^2 + 1.
        c2 = c * c
        cos_m = (8.0 * c2 - 8.0) * c2 + 1.0

        # k = floor(m*acos(c)/pi) via cos thresholds; (-1)^k via parity formula.
        k_cnt = jnp.zeros_like(c)
        for thr in _K_THRESHOLDS:
            k_cnt = k_cnt + (c <= thr).astype(jnp.float32)
        parity = k_cnt - 2.0 * jnp.floor(k_cnt * 0.5)
        sign = 1.0 - 2.0 * parity

        phi = sign * cos_m - 2.0 * k_cnt

        cos_ref[...] = (c * xlen).astype(cos_ref.dtype)
        phi_ref[...] = (phi * xlen).astype(phi_ref.dtype)


@functools.partial(jax.jit,
                   static_argnames=("tm_max", "tn_max", "tk_max",
                                    "mm_dtype", "out_dtype"))
def angle_linear(x, w, *, tm_max=512, tn_max=512, tk_max=1024,
                 mm_dtype=jnp.bfloat16, out_dtype=jnp.float32):
    B, D = x.shape
    D2, C = w.shape
    assert D == D2

    xf = x.astype(jnp.float32)
    # Row norms of x (small B x D pass); weight-column norms are computed
    # inside the kernel so the (potentially large) weight is read only once.
    xlen = jnp.sqrt(jnp.sum(xf * xf, axis=1, keepdims=True))   # (B, 1)

    # (8,128)-aligned, lane-dense, divisor-aware tiles.
    tm, Bp = _pick_tile(B, 8, tm_max)
    tn, Cp = _pick_tile(C, 128, tn_max)
    tk, Dp = _pick_tile(D, 128, tk_max)

    # Cast to the GEMM dtype first so any pad copy moves half the bytes.
    xp = _pad2(x.astype(mm_dtype), Bp, Dp)
    wp = _pad2(w.astype(mm_dtype), Dp, Cp)
    xlen_p = _pad2(xlen, Bp, 1)

    grid = (Bp // tm, Cp // tn, Dp // tk)

    cos_p, phi_p = pl.pallas_call(
        angle_linear_kernel,
        out_shape=(
            jax.ShapeDtypeStruct((Bp, Cp), out_dtype),
            jax.ShapeDtypeStruct((Bp, Cp), out_dtype),
        ),
        grid_spec=pltpu.PrefetchScalarGridSpec(
            num_scalar_prefetch=0,
            grid=grid,
            in_specs=[
                pl.BlockSpec((tm, tk), lambda i, j, k: (i, k)),   # x tile
                pl.BlockSpec((tk, tn), lambda i, j, k: (k, j)),   # w tile
                pl.BlockSpec((tm, 1), lambda i, j, k: (i, 0)),    # ||x_row||
            ],
            out_specs=(
                pl.BlockSpec((tm, tn), lambda i, j, k: (i, j)),
                pl.BlockSpec((tm, tn), lambda i, j, k: (i, j)),
            ),
            scratch_shapes=[
                pltpu.VMEM((tm, tn), jnp.float32),   # f32 accumulator
                pltpu.VMEM((1, tn), jnp.float32),    # per-column sum(w^2)
            ],
        ),
        compiler_params=pltpu.CompilerParams(
            dimension_semantics=("parallel", "parallel", "arbitrary"),
            # Footprint is ~10 MiB at max tiles; keep the cap under the v7x
            # 64 MiB physical VMEM while allowing headroom on v5e/v6e.
            vmem_limit_bytes=48 * 1024 * 1024,
        ),
        cost_estimate=pl.CostEstimate(
            flops=2 * Bp * Cp * Dp,
            transcendentals=0,
            bytes_accessed=(jnp.dtype(mm_dtype).itemsize * (Bp * Dp + Dp * Cp)
                            + jnp.dtype(out_dtype).itemsize * 2 * Bp * Cp
                            + 4 * Bp),
        ),
    )(xp, wp, xlen_p)

    return cos_p[:B, :C], phi_p[:B, :C]


def angle_linear_ref(x, w):
    """Pure-JAX f32 reference mirroring the PyTorch forward (phiflag=True, m=4)."""
    x = x.astype(jnp.float32)
    w = w.astype(jnp.float32)
    col_norm = jnp.sqrt(jnp.sum(w * w, axis=0, keepdims=True))
    ww = w * jnp.minimum(1.0, 1e-5 / (col_norm + 1e-7)) * 1e5
    xlen = jnp.sqrt(jnp.sum(x * x, axis=1, keepdims=True))
    wlen = jnp.sqrt(jnp.sum(ww * ww, axis=0, keepdims=True))
    c = jnp.clip(jnp.dot(x, ww) / xlen / wlen, -1.0, 1.0)
    cos_m = 8 * c**4 - 8 * c**2 + 1
    theta = jnp.arccos(c)
    k = jnp.floor(M_MARGIN * theta / PI_CONST)
    phi = (1.0 - 2.0 * jnp.mod(k, 2.0)) * cos_m - 2.0 * k
    return c * xlen, phi * xlen


if __name__ == "__main__":
    B, in_features, out_features = 8, 32, 16

    key = jax.random.PRNGKey(0)
    kx, kw = jax.random.split(key)
    x = jax.random.normal(kx, (B, in_features), dtype=jnp.float32)
    # Deterministic init mimicking weight.data.uniform_(-1, 1); the renorm in
    # the forward pass handles the normalization every call.
    w = jax.random.uniform(kw, (in_features, out_features),
                           dtype=jnp.float32, minval=-1.0, maxval=1.0)

    cos_ref, phi_ref = angle_linear_ref(x, w)

    # 1) f32 GEMM path: strict semantic check against the module reference.
    cos_f32, phi_f32 = jax.block_until_ready(
        angle_linear(x, w, mm_dtype=jnp.float32))
    assert jnp.allclose(cos_f32, cos_ref, atol=1e-4, rtol=1e-4)
    assert jnp.allclose(phi_f32, phi_ref, atol=1e-4, rtol=1e-4)

    # 2) Default fast path: bf16 MXU inputs, f32 accumulation/epilogue.
    cos_bf, phi_bf = jax.block_until_ready(angle_linear(x, w))
    assert jnp.allclose(cos_bf, cos_ref, atol=5e-2, rtol=5e-2)
    # phi is discontinuous in k at the Chebyshev thresholds, so bf16 GEMM noise
    # can legitimately move an element across a threshold; exclude the narrow
    # band around each threshold and check everything else.
    xlen = jnp.sqrt(jnp.sum(x * x, axis=1, keepdims=True))
    c_ref = cos_ref / xlen
    near_thr = jnp.zeros(c_ref.shape, dtype=bool)
    for thr in _K_THRESHOLDS:
        near_thr = near_thr | (jnp.abs(c_ref - thr) < 2e-2)
    phi_ok = jnp.abs(phi_bf - phi_ref) <= 0.5 + 5e-2 * jnp.abs(phi_ref)
    assert bool(jnp.all(jnp.where(near_thr, True, phi_ok)))

    print("KERNEL_OK")
</pallas_src>

<mosaic_0001>
module attributes {stable_mosaic.version = 11 : i64} {
  func.func @angle_linear_kernel(%arg0: i32, %arg1: i32, %arg2: i32, %arg3: memref<8x128xf32, #tpu.memory_space<vmem>>, %arg4: memref<128x128xf32, #tpu.memory_space<vmem>>, %arg5: memref<8x1xf32, #tpu.memory_space<vmem>>, %arg6: memref<8x128xf32, #tpu.memory_space<vmem>>, %arg7: memref<8x128xf32, #tpu.memory_space<vmem>>, %arg8: memref<8x128xf32, #tpu.memory_space<vmem>>, %arg9: memref<1x128xf32, #tpu.memory_space<vmem>>) attributes {dimension_semantics = [#tpu.dimension_semantics<parallel>, #tpu.dimension_semantics<parallel>, #tpu.dimension_semantics<arbitrary>], iteration_bounds = array<i64: 1, 1, 1>, scalar_prefetch = 0 : i64, scratch_operands = 2 : i64, tpu.core_type = #tpu.core_type<tc>, window_params = [{transform_indices = @transform_0, window_bounds = array<i64: 8, 128>}, {transform_indices = @transform_1, window_bounds = array<i64: 128, 128>}, {transform_indices = @transform_2, window_bounds = array<i64: 8, 1>}, {transform_indices = @transform_3, window_bounds = array<i64: 8, 128>}, {transform_indices = @transform_4, window_bounds = array<i64: 8, 128>}]} {
    %c0_i32 = arith.constant 0 : i32
    %0 = arith.cmpi eq, %arg2, %c0_i32 : i32
    %1 = arith.extui %0 : i1 to i32
    %c0_i32_0 = arith.constant 0 : i32
    %2 = arith.cmpi ne, %1, %c0_i32_0 : i32
    scf.if %2 {
      %cst_17 = arith.constant 0.000000e+00 : f32
      %19 = vector.broadcast %cst_17 : f32 to vector<8x128xf32>
      %c0_18 = arith.constant 0 : index
      %c0_19 = arith.constant 0 : index
      %20 = vector.load %arg8[%c0_18, %c0_19] : memref<8x128xf32, #tpu.memory_space<vmem>>, vector<8x128xf32>
      tpu.vector_store %arg8[%c0_18, %c0_19], %19 {strides = array<i32>} : memref<8x128xf32, #tpu.memory_space<vmem>>, vector<8x128xf32>,
      %cst_20 = arith.constant 0.000000e+00 : f32
      %21 = vector.broadcast %cst_20 : f32 to vector<1x128xf32>
      %c0_21 = arith.constant 0 : index
      %c0_22 = arith.constant 0 : index
      %22 = vector.load %arg9[%c0_21, %c0_22] : memref<1x128xf32, #tpu.memory_space<vmem>>, vector<1x128xf32>
      tpu.vector_store %arg9[%c0_21, %c0_22], %21 {strides = array<i32>} : memref<1x128xf32, #tpu.memory_space<vmem>>, vector<1x128xf32>,
    } else {
    }
    %c0 = arith.constant 0 : index
    %c0_1 = arith.constant 0 : index
    %3 = vector.load %arg8[%c0, %c0_1] : memref<8x128xf32, #tpu.memory_space<vmem>>, vector<8x128xf32>
    %c0_2 = arith.constant 0 : index
    %c0_3 = arith.constant 0 : index
    %4 = vector.load %arg3[%c0_2, %c0_3] : memref<8x128xf32, #tpu.memory_space<vmem>>, vector<8x128xf32>
    %c0_4 = arith.constant 0 : index
    %c0_5 = arith.constant 0 : index
    %5 = vector.load %arg4[%c0_4, %c0_5] : memref<128x128xf32, #tpu.memory_space<vmem>>, vector<128x128xf32>
    %cst = arith.constant dense<0.000000e+00> : vector<8x128xf32>
    %6 = tpu.matmul %4, %5, %cst {dimension_numbers = #tpu.dot_dimension_numbers<[1], [0], [0], [1], [0, 0, 1, 1], [], []>} : vector<8x128xf32>, vector<128x128xf32>, vector<8x128xf32> -> vector<8x128xf32>
    %7 = arith.addf %3, %6 : vector<8x128xf32>
    %c0_6 = arith.constant 0 : index
    %c0_7 = arith.constant 0 : index
    %8 = vector.load %arg8[%c0_6, %c0_7] : memref<8x128xf32, #tpu.memory_space<vmem>>, vector<8x128xf32>
    tpu.vector_store %arg8[%c0_6, %c0_7], %7 {strides = array<i32>} : memref<8x128xf32, #tpu.memory_space<vmem>>, vector<8x128xf32>,
    %c0_8 = arith.constant 0 : index
    %c0_9 = arith.constant 0 : index
    %9 = vector.load %arg4[%c0_8, %c0_9] : memref<128x128xf32, #tpu.memory_space<vmem>>, vector<128x128xf32>
    %c0_10 = arith.constant 0 : index
    %c0_11 = arith.constant 0 : index
    %10 = vector.load %arg9[%c0_10, %c0_11] : memref<1x128xf32, #tpu.memory_space<vmem>>, vector<1x128xf32>
    %11 = arith.mulf %9, %9 : vector<128x128xf32>
    %cst_12 = arith.constant dense<0.000000e+00> : vector<128xf32>
    %12 = vector.multi_reduction <add>, %11, %cst_12 [0] : vector<128x128xf32> to vector<128xf32>
    %13 = vector.shape_cast %12 : vector<128xf32> to vector<1x128xf32>
    %14 = arith.addf %10, %13 : vector<1x128xf32>
    %c0_13 = arith.constant 0 : index
    %c0_14 = arith.constant 0 : index
    %15 = vector.load %arg9[%c0_13, %c0_14] : memref<1x128xf32, #tpu.memory_space<vmem>>, vector<1x128xf32>
    tpu.vector_store %arg9[%c0_13, %c0_14], %14 {strides = array<i32>} : memref<1x128xf32, #tpu.memory_space<vmem>>, vector<1x128xf32>,
    %c0_i32_15 = arith.constant 0 : i32
    %16 = arith.cmpi eq, %arg2, %c0_i32_15 : i32
    %17 = arith.extui %16 : i1 to i32
    %c0_i32_16 = arith.constant 0 : i32
    %18 = arith.cmpi ne, %17, %c0_i32_16 : i32
    scf.if %18 {
      %c0_17 = arith.constant 0 : index
      %c0_18 = arith.constant 0 : index
      %19 = vector.load %arg5[%c0_17, %c0_18] : memref<8x1xf32, #tpu.memory_space<vmem>>, vector<8x1xf32>
      %cst_19 = arith.constant 0.000000e+00 : f32
      %20 = vector.broadcast %cst_19 : f32 to vector<8x1xf32>
      %21 = arith.cmpf ogt, %19, %20 : vector<8x1xf32>
      %cst_20 = arith.constant 1.000000e+00 : f32
      %22 = vector.broadcast %cst_20 : f32 to vector<8x1xf32>
      %23 = arith.divf %22, %19 : vector<8x1xf32>
      %cst_21 = arith.constant 0.000000e+00 : f32
      %24 = vector.broadcast %cst_21 : f32 to vector<8x1xf32>
      %25 = arith.select %21, %23, %24 : vector<8x1xi1>, vector<8x1xf32>
      %c0_22 = arith.constant 0 : index
      %c0_23 = arith.constant 0 : index
      %26 = vector.load %arg9[%c0_22, %c0_23] : memref<1x128xf32, #tpu.memory_space<vmem>>, vector<1x128xf32>
      %cst_24 = arith.constant 0.000000e+00 : f32
      %27 = vector.broadcast %cst_24 : f32 to vector<1x128xf32>
      %28 = arith.cmpf ogt, %26, %27 : vector<1x128xf32>
      %29 = math.rsqrt %26 : vector<1x128xf32>
      %cst_25 = arith.constant 0.000000e+00 : f32
      %30 = vector.broadcast %cst_25 : f32 to vector<1x128xf32>
      %31 = arith.select %28, %29, %30 : vector<1x128xi1>, vector<1x128xf32>
      %c0_26 = arith.constant 0 : index
      %c0_27 = arith.constant 0 : index
      %32 = vector.load %arg8[%c0_26, %c0_27] : memref<8x128xf32, #tpu.memory_space<vmem>>, vector<8x128xf32>
      %33 = vector.broadcast %31 : vector<1x128xf32> to vector<8x128xf32>
      %34 = arith.mulf %32, %33 : vector<8x128xf32>
      %35 = vector.broadcast %25 : vector<8x1xf32> to vector<8x128xf32>
      %36 = arith.mulf %34, %35 : vector<8x128xf32>
      %cst_28 = arith.constant -1.000000e+00 : f32
      %cst_29 = arith.constant 1.000000e+00 : f32
      %37 = vector.broadcast %cst_28 : f32 to vector<8x128xf32>
      %38 = arith.maximumf %37, %36 : vector<8x128xf32>
      %39 = vector.broadcast %cst_29 : f32 to vector<8x128xf32>
      %40 = arith.minimumf %39, %38 : vector<8x128xf32>
      %41 = arith.mulf %40, %40 : vector<8x128xf32>
      %cst_30 = arith.constant 8.000000e+00 : f32
      %42 = vector.broadcast %cst_30 : f32 to vector<8x128xf32>
      %43 = arith.mulf %42, %41 : vector<8x128xf32>
      %cst_31 = arith.constant 8.000000e+00 : f32
      %44 = vector.broadcast %cst_31 : f32 to vector<8x128xf32>
      %45 = arith.subf %43, %44 : vector<8x128xf32>
      %46 = arith.mulf %45, %41 : vector<8x128xf32>
      %cst_32 = arith.constant 1.000000e+00 : f32
      %47 = vector.broadcast %cst_32 : f32 to vector<8x128xf32>
      %48 = arith.addf %46, %47 : vector<8x128xf32>
      %cst_33 = arith.constant 0.000000e+00 : f32
      %49 = vector.broadcast %cst_33 : f32 to vector<8x128xf32>
      %cst_34 = arith.constant 0.707106769 : f32
      %50 = vector.broadcast %cst_34 : f32 to vector<8x128xf32>
      %51 = arith.cmpf ole, %40, %50 : vector<8x128xf32>
      %52 = arith.extui %51 : vector<8x128xi1> to vector<8x128xi32>
      %53 = arith.sitofp %52 : vector<8x128xi32> to vector<8x128xf32>
      %54 = arith.addf %49, %53 : vector<8x128xf32>
      %cst_35 = arith.constant 1.79489656E-9 : f32
      %55 = vector.broadcast %cst_35 : f32 to vector<8x128xf32>
      %56 = arith.cmpf ole, %40, %55 : vector<8x128xf32>
      %57 = arith.extui %56 : vector<8x128xi1> to vector<8x128xi32>
      %58 = arith.sitofp %57 : vector<8x128xi32> to vector<8x128xf32>
      %59 = arith.addf %54, %58 : vector<8x128xf32>
      %cst_36 = arith.constant -0.707106769 : f32
      %60 = vector.broadcast %cst_36 : f32 to vector<8x128xf32>
      %61 = arith.cmpf ole, %40, %60 : vector<8x128xf32>
      %62 = arith.extui %61 : vector<8x128xi1> to vector<8x128xi32>
      %63 = arith.sitofp %62 : vector<8x128xi32> to vector<8x128xf32>
      %64 = arith.addf %59, %63 : vector<8x128xf32>
      %cst_37 = arith.constant -1.000000e+00 : f32
      %65 = vector.broadcast %cst_37 : f32 to vector<8x128xf32>
      %66 = arith.cmpf ole, %40, %65 : vector<8x128xf32>
      %67 = arith.extui %66 : vector<8x128xi1> to vector<8x128xi32>
      %68 = arith.sitofp %67 : vector<8x128xi32> to vector<8x128xf32>
      %69 = arith.addf %64, %68 : vector<8x128xf32>
      %cst_38 = arith.constant 5.000000e-01 : f32
      %70 = vector.broadcast %cst_38 : f32 to vector<8x128xf32>
      %71 = arith.mulf %69, %70 : vector<8x128xf32>
      %72 = math.floor %71 : vector<8x128xf32>
      %cst_39 = arith.constant 2.000000e+00 : f32
      %73 = vector.broadcast %cst_39 : f32 to vector<8x128xf32>
      %74 = arith.mulf %73, %72 : vector<8x128xf32>
      %75 = arith.subf %69, %74 : vector<8x128xf32>
      %cst_40 = arith.constant 2.000000e+00 : f32
      %76 = vector.broadcast %cst_40 : f32 to vector<8x128xf32>
      %77 = arith.mulf %76, %75 : vector<8x128xf32>
      %cst_41 = arith.constant 1.000000e+00 : f32
      %78 = vector.broadcast %cst_41 : f32 to vector<8x128xf32>
      %79 = arith.subf %78, %77 : vector<8x128xf32>
      %80 = arith.mulf %79, %48 : vector<8x128xf32>
      %cst_42 = arith.constant 2.000000e+00 : f32
      %81 = vector.broadcast %cst_42 : f32 to vector<8x128xf32>
      %82 = arith.mulf %81, %69 : vector<8x128xf32>
      %83 = arith.subf %80, %82 : vector<8x128xf32>
      %84 = vector.broadcast %19 : vector<8x1xf32> to vector<8x128xf32>
      %85 = arith.mulf %40, %84 : vector<8x128xf32>
      %c0_43 = arith.constant 0 : index
      %c0_44 = arith.constant 0 : index
      %86 = vector.load %arg6[%c0_43, %c0_44] : memref<8x128xf32, #tpu.memory_space<vmem>>, vector<8x128xf32>
      tpu.vector_store %arg6[%c0_43, %c0_44], %85 {strides = array<i32>} : memref<8x128xf32, #tpu.memory_space<vmem>>, vector<8x128xf32>,
      %87 = vector.broadcast %19 : vector<8x1xf32> to vector<8x128xf32>
      %88 = arith.mulf %83, %87 : vector<8x128xf32>
      %c0_45 = arith.constant 0 : index
      %c0_46 = arith.constant 0 : index
      %89 = vector.load %arg7[%c0_45, %c0_46] : memref<8x128xf32, #tpu.memory_space<vmem>>, vector<8x128xf32>
      tpu.vector_store %arg7[%c0_45, %c0_46], %88 {strides = array<i32>} : memref<8x128xf32, #tpu.memory_space<vmem>>, vector<8x128xf32>,
    } else {
    }
    return
  }
  func.func @transform_0(%arg0: i32, %arg1: i32, %arg2: i32) -> (i32, i32) {
    %c0_i32 = arith.constant 0 : i32
    return %arg0, %arg2 : i32, i32
  }
  func.func @transform_1(%arg0: i32, %arg1: i32, %arg2: i32) -> (i32, i32) {
    %c0_i32 = arith.constant 0 : i32
    return %arg2, %arg1 : i32, i32
  }
  func.func @transform_2(%arg0: i32, %arg1: i32, %arg2: i32) -> (i32, i32) {
    %c0_i32 = arith.constant 0 : i32
    %c0_i32_0 = arith.constant 0 : i32
    return %arg0, %c0_i32 : i32, i32
  }
  func.func @transform_3(%arg0: i32, %arg1: i32, %arg2: i32) -> (i32, i32) {
    %c0_i32 = arith.constant 0 : i32
    return %arg0, %arg1 : i32, i32
  }
  func.func @transform_4(%arg0: i32, %arg1: i32, %arg2: i32) -> (i32, i32) {
    %c0_i32 = arith.constant 0 : i32
    return %arg0, %arg1 : i32, i32
  }
}

</mosaic_0001>

<llo_original>
// kernel: angle_linear.1
$region0: #{angle_linear.1}
  #allocation0 [shape = 'u32[]', space=smem, size = 0x4, offset = 0x4, fixed_abs, tag = 'smem constant byte address 0x4 - core index']
  #allocation1 [shape = 'u32[144,128]{1,0:T(1,128)}', space=vmem, size = 0x12000, scoped, tag = 'internal scratch']
  #allocation2 [shape = 'f32[8,128]{1,0:T(8,128)}', space=vmem, size = 0x1000, scoped, tag = 'scratch operand']
  #allocation3 [shape = 'f32[1,128]{1,0:T(1,128)}', space=vmem, size = 0x200, scoped, tag = 'scratch operand']
  %s0 = inlined_call_operand.vmem [shape: f32[8,128], index: 0, kind: input, shape index: {}]
  %s1 = inlined_call_operand.vmem [shape: f32[128,128], index: 1, kind: input, shape index: {}]
  %s2 = inlined_call_operand.vmem [shape: f32[8,1], index: 2, kind: input, shape index: {}]
  %s3 = inlined_call_operand.hbm [shape: f32[8,128], index: 3, kind: output, shape index: {0}]
  %s4 = inlined_call_operand.hbm [shape: f32[8,128], index: 4, kind: output, shape index: {1}]
  %5 = xla_tuple %s3, %s4
  %s6 = sld [smem:[#allocation0]]
  $region38: #{angle_linear.1} parent=0
    _
  %s8 = ssub.s32 1, %s6
  %s9 = scalar_select 0, %s8, %s6
  $region1: #{angle_linear.1} parent=0
    #allocation4 [shape = 'u8[4096]{0}', space=vmem, size = 0x1000, scoped, tag = 'output window, operand 0, single buffered']
    #allocation5 [shape = 's32[1]{0}', space=sflag, size = 0x4, scoped, tag = 'scoped memory for angle_linear.1']
    #allocation6 [shape = 'u8[4096]{0}', space=vmem, size = 0x1000, scoped, tag = 'output window, operand 1, single buffered']
    #allocation7 [shape = 's32[1]{0}', space=sflag, size = 0x4, scoped, tag = 'scoped memory for angle_linear.1']
    %10 = vsyncpa [#allocation5], 0
    %11 = vsyncpa [#allocation7], 0
    // Predicated region
    $region2: #{angle_linear.1} parent=1 // pred_check
      _
    $region3: #{angle_linear.1} parent=1 // pred_check_branch
      %13 = sbr.rel (0) target = $region5
    $region4: #{angle_linear.1} parent=1 // pred_region
      _
    $region5: #{angle_linear.1} parent=1 // pred_fallthru
      _
    // Predicated region
    $region6: #{angle_linear.1} parent=1 // pred_check
      _
    $region7: #{angle_linear.1} parent=1 // pred_check_branch
      %15 = sbr.rel (0) target = $region9
    $region8: #{angle_linear.1} parent=1 // pred_region
      _
    $region9: #{angle_linear.1} parent=1 // pred_fallthru
      _
    // Predicated region
    $region10: #{angle_linear.1} parent=1 // pred_check
      _
    $region11: #{angle_linear.1} parent=1 // pred_check_branch
      %17 = sbr.rel (0) target = $region13
    $region12: #{angle_linear.1} parent=1 // pred_region
      _
    $region13: #{angle_linear.1} parent=1 // pred_fallthru
      _
    %p18 = scmp.eq.s32.totalorder 0, 0
    // Predicated region
    $region14: #{angle_linear.1} parent=1 // pred_check
      %p19 = pneg %p18
    $region15: #{angle_linear.1} parent=1 // pred_check_branch
      %21 = sbr.rel (%p19) target = $region17
    $region16: #{angle_linear.1} parent=1 // pred_region
      %22 = vst [vmem:[#allocation2] sm:$0xff] 0.0
      %23 = vst [vmem:[#allocation3] sm:$0x1] 0.0
    $region17: #{angle_linear.1} parent=1 // pred_fallthru
      _
    %v24 = vld [vmem:[#allocation2] sm:$0xff]
    %v25 = vld [vmem:[%s0] sm:$0xff]
    %v26 = vld [vmem:[%s1] sm:$0xff]
    %v27 = vld [vmem:[%s1 + $0x8] sm:$0xff]
    %v28 = vld [vmem:[%s1 + $0x10] sm:$0xff]
    %v29 = vld [vmem:[%s1 + $0x18] sm:$0xff]
    %v30 = vld [vmem:[%s1 + $0x20] sm:$0xff]
    %v31 = vld [vmem:[%s1 + $0x28] sm:$0xff]
    %v32 = vld [vmem:[%s1 + $0x30] sm:$0xff]
    %v33 = vld [vmem:[%s1 + $0x38] sm:$0xff]
    %v34 = vld [vmem:[%s1 + $0x40] sm:$0xff]
    %v35 = vld [vmem:[%s1 + $0x48] sm:$0xff]
    %v36 = vld [vmem:[%s1 + $0x50] sm:$0xff]
    %v37 = vld [vmem:[%s1 + $0x58] sm:$0xff]
    %v38 = vld [vmem:[%s1 + $0x60] sm:$0xff]
    %v39 = vld [vmem:[%s1 + $0x68] sm:$0xff]
    %v40 = vld [vmem:[%s1 + $0x70] sm:$0xff]
    %v41 = vld [vmem:[%s1 + $0x78] sm:$0xff]
    %42 = vmatprep.subr.mxu0 0.0
    %43 = vmatpush1.msra.mxu0 %v26
    %44 = vmatprep.subr.mxu0 0.0
    %45 = vmatpush1.msra.mxu0 %v27
    %46 = vmatprep.subr.mxu0 0.0
    %47 = vmatpush1.msra.mxu0 %v28
    %48 = vmatprep.subr.mxu0 0.0
    %49 = vmatpush1.msra.mxu0 %v29
    %50 = vmatprep.subr.mxu0 0.0
    %51 = vmatpush1.msra.mxu0 %v30
    %52 = vmatprep.subr.mxu0 0.0
    %53 = vmatpush1.msra.mxu0 %v31
    %54 = vmatprep.subr.mxu0 0.0
    %55 = vmatpush1.msra.mxu0 %v32
    %56 = vmatprep.subr.mxu0 0.0
    %57 = vmatpush1.msra.mxu0 %v33
    %58 = vmatprep.subr.mxu0 0.0
    %59 = vmatpush1.msra.mxu0 %v34
    %60 = vmatprep.subr.mxu0 0.0
    %61 = vmatpush1.msra.mxu0 %v35
    %62 = vmatprep.subr.mxu0 0.0
    %63 = vmatpush1.msra.mxu0 %v36
    %64 = vmatprep.subr.mxu0 0.0
    %65 = vmatpush1.msra.mxu0 %v37
    %66 = vmatprep.subr.mxu0 0.0
    %67 = vmatpush1.msra.mxu0 %v38
    %68 = vmatprep.subr.mxu0 0.0
    %69 = vmatpush1.msra.mxu0 %v39
    %70 = vmatprep.subr.mxu0 0.0
    %71 = vmatpush1.msra.mxu0 %v40
    %72 = vmatprep.subr.mxu0 0.0
    %73 = vmatpush1.msra.mxu0 %v41
    %74 = vmatprep.subr.mxu0 0.0
    %75 = vmatpush1.msra.mxu0 0.0
    %76 = vmatprep.subr.mxu0 0.0
    %77 = vmatpush1.msra.mxu0 0.0
    %78 = vmatprep.subr.mxu0 0.0
    %79 = vmatpush1.msra.mxu0 0.0
    %80 = vmatprep.subr.mxu0 0.0
    %81 = vmatpush1.msra.mxu0 0.0
    %82 = vmatprep.subr.mxu0 0.0
    %83 = vmatpush1.msra.mxu0 0.0
    %84 = vmatprep.subr.mxu0 0.0
    %85 = vmatpush1.msra.mxu0 0.0
    %86 = vmatprep.subr.mxu0 0.0
    %87 = vmatpush1.msra.mxu0 0.0
    %88 = vmatprep.subr.mxu0 0.0
    %89 = vmatpush1.msra.mxu0 0.0
    %90 = vmatprep.subr.mxu0 0.0
    %91 = vmatpush1.msra.mxu0 0.0
    %92 = vmatprep.subr.mxu0 0.0
    %93 = vmatpush1.msra.mxu0 0.0
    %94 = vmatprep.subr.mxu0 0.0
    %95 = vmatpush1.msra.mxu0 0.0
    %96 = vmatprep.subr.mxu0 0.0
    %97 = vmatpush1.msra.mxu0 0.0
    %98 = vmatprep.subr.mxu0 0.0
    %99 = vmatpush1.msra.mxu0 0.0
    %100 = vmatprep.subr.mxu0 0.0
    %101 = vmatpush1.msra.mxu0 0.0
    %102 = vmatprep.subr.mxu0 0.0
    %103 = vmatpush1.msra.mxu0 0.0
    %104 = vmatprep.subr.mxu0 0.0
    %105 = vmatpush1.msra.mxu0 0.0
    %106 = vmatprep.mubr.f32.mxu0 0.0
    %107 = vmatmul.mubr.f32.gmra.mrb[0].mxu0 %v25
    %v108 = vpop.f32.mrb[0].mxu0
    %v109 = vadd.f32 0.0, %v108
    %v110 = vpop.f32.mrb[0].mxu0
    %111 = vdwg.mxu0
    %v112 = vadd.f32 %v24, %v109
    %113 = vst [vmem:[#allocation2] sm:$0xff] %v112
    %v114 = vld [vmem:[%s1] sm:$0xff]
    %v115 = vld [vmem:[%s1 + $0x8] sm:$0xff]
    %v116 = vld [vmem:[%s1 + $0x10] sm:$0xff]
    %v117 = vld [vmem:[%s1 + $0x18] sm:$0xff]
    %v118 = vld [vmem:[%s1 + $0x20] sm:$0xff]
    %v119 = vld [vmem:[%s1 + $0x28] sm:$0xff]
    %v120 = vld [vmem:[%s1 + $0x30] sm:$0xff]
    %v121 = vld [vmem:[%s1 + $0x38] sm:$0xff]
    %v122 = vld [vmem:[%s1 + $0x40] sm:$0xff]
    %v123 = vld [vmem:[%s1 + $0x48] sm:$0xff]
    %v124 = vld [vmem:[%s1 + $0x50] sm:$0xff]
    %v125 = vld [vmem:[%s1 + $0x58] sm:$0xff]
    %v126 = vld [vmem:[%s1 + $0x60] sm:$0xff]
    %v127 = vld [vmem:[%s1 + $0x68] sm:$0xff]
    %v128 = vld [vmem:[%s1 + $0x70] sm:$0xff]
    %v129 = vld [vmem:[%s1 + $0x78] sm:$0xff]
    %v130 = vld [vmem:[#allocation3] sm:$0x1]
    %v131 = vmul.f32 %v114, %v114
    %v132 = vmul.f32 %v115, %v115
    %v133 = vmul.f32 %v116, %v116
    %v134 = vmul.f32 %v117, %v117
    %v135 = vmul.f32 %v118, %v118
    %v136 = vmul.f32 %v119, %v119
    %v137 = vmul.f32 %v120, %v120
    %v138 = vmul.f32 %v121, %v121
    %v139 = vmul.f32 %v122, %v122
    %v140 = vmul.f32 %v123, %v123
    %v141 = vmul.f32 %v124, %v124
    %v142 = vmul.f32 %v125, %v125
    %v143 = vmul.f32 %v126, %v126
    %v144 = vmul.f32 %v127, %v127
    %v145 = vmul.f32 %v128, %v128
    %v146 = vmul.f32 %v129, %v129
    %v147 = vadd.f32 %v131, %v132
    %v148 = vadd.f32 %v147, %v133
    %v149 = vadd.f32 %v148, %v134
    %v150 = vadd.f32 %v149, %v135
    %v151 = vadd.f32 %v150, %v136
    %v152 = vadd.f32 %v151, %v137
    %v153 = vadd.f32 %v152, %v138
    %v154 = vadd.f32 %v153, %v139
    %v155 = vadd.f32 %v154, %v140
    %v156 = vadd.f32 %v155, %v141
    %v157 = vadd.f32 %v156, %v142
    %v158 = vadd.f32 %v157, %v143
    %v159 = vadd.f32 %v158, %v144
    %v160 = vadd.f32 %v159, %v145
    %v161 = vadd.f32 %v160, %v146
    %v162 = vrot.slane %v161, 4
    %v163 = vadd.f32 %v161, %v162
    %v164 = vrot.slane %v163, 2
    %v165 = vadd.f32 %v163, %v164
    %v166 = vrot.slane %v165, 1
    %v167 = vadd.f32 %v165, %v166
    %v168 = vadd.f32 %v130, %v167
    %169 = vst [vmem:[#allocation3] sm:$0x1] %v168
    // Predicated region
    $region18: #{angle_linear.1} parent=1 // pred_check
      %p170 = pneg %p18
    $region19: #{angle_linear.1} parent=1 // pred_check_branch
      %172 = sbr.rel (%p170) target = $region21
    $region20: #{angle_linear.1} parent=1 // pred_region
      %v173 = vld [vmem:[%s2] sm:$0xff]
      %vm174 = vcmp.gt.f32.partialorder %v173, 0.0
      %v175 = vrcp.pop %v173
      %v176 = vmul.f32 1.0, %v175
      %v177 = vsel %vm174, %v176, 0.0
      %v178 = vld [vmem:[#allocation3] sm:$0x1]
      %vm179 = vcmp.gt.f32.partialorder %v178, 0.0
      %v180 = vrsqrt.pop %v178
      %v181 = vsel %vm179, %v180, 0.0
      %v182 = vld [vmem:[#allocation2] sm:$0xff]
      %v184 = vlaneseq
      %v185 = vshrl.u32 %v184, 7
      %v186 = vsub.s32 0, %v185
      %v187 = vrot.slane %v181, %v186
      %v189 = vmul.f32 %v182, %v187
      %191 = vset.pattern.permute.xlu0 0
      %192 = vperm.xlu0 %191, %v177
      %v193 = vpop.permute.xlu0 %192
      %v195 = vmul.f32 %v189, %v193
      %v196 = vmax.f32 %v195, -1.0
      %v197 = vmin.f32 %v196, 1.0
      %v198 = vmul.f32 %v197, %v197
      %v199 = vmul.f32 %v198, 8.0
      %v200 = vsub.f32 %v199, 8.0
      %v201 = vmul.f32 %v200, %v198
      %v202 = vadd.f32 %v201, 1.0
      %vm203 = vcmp.le.f32.partialorder %v197, 0.70710677
      %v204 = vsel %vm203, 1, 0
      %v205 = vcvt.s32.f32 %v204
      %v206 = vadd.f32 %v205, 0.0
      %vm207 = vcmp.le.f32.partialorder %v197, 1.7948966e-09
      %v208 = vsel %vm207, 1, 0
      %v209 = vcvt.s32.f32 %v208
      %v210 = vadd.f32 %v206, %v209
      %vm211 = vcmp.le.f32.partialorder %v197, -0.70710677
      %v212 = vsel %vm211, 1, 0
      %v213 = vcvt.s32.f32 %v212
      %v214 = vadd.f32 %v210, %v213
      %vm215 = vcmp.le.f32.partialorder %v197, -1.0
      %v216 = vsel %vm215, 1, 0
      %v217 = vcvt.s32.f32 %v216
      %v218 = vadd.f32 %v214, %v217
      %v219 = vmul.f32 %v218, 0.5
      %v220 = vfloor.f32 %v219
      %v221 = vmul.f32 %v220, 2.0
      %v222 = vsub.f32 %v218, %v221
      %v223 = vmul.f32 %v222, 2.0
      %v224 = vsub.f32 1.0, %v223
      %v225 = vmul.f32 %v224, %v202
      %v226 = vmul.f32 %v218, 2.0
      %v227 = vsub.f32 %v225, %v226
      %229 = vset.pattern.permute.xlu0 0
      %230 = vperm.xlu0 %229, %v173
      %v231 = vpop.permute.xlu0 %230
      %v233 = vmul.f32 %v197, %v231
      %234 = vst [vmem:[#allocation4] sm:$0xff] %v233
      %v235 = vmul.f32 %v227, %v231
      %236 = vst [vmem:[#allocation6] sm:$0xff] %v235
    $region21: #{angle_linear.1} parent=1 // pred_fallthru
      _
    // Predicated region
    $region22: #{angle_linear.1} parent=1 // pred_check
      _
    $region23: #{angle_linear.1} parent=1 // pred_check_branch
      %238 = sbr.rel (0) target = $region25
    $region24: #{angle_linear.1} parent=1 // pred_region
      %s240 = ssub.s32 128, 128
      %241 = vsyncadd [#allocation5], %s240
      %s243 = sshll.u32 [#allocation4], 4
      %s244 = int_to_ptr.vmem [resolvable:$true] %s243
      %246 = dma.vmem_to_hbm [thread:$0]  %s244, 128, %s3, [#allocation5]
    $region25: #{angle_linear.1} parent=1 // pred_fallthru
      _
    // Predicated region
    $region26: #{angle_linear.1} parent=1 // pred_check
      _
    $region27: #{angle_linear.1} parent=1 // pred_check_branch
      %248 = sbr.rel (0) target = $region29
    $region28: #{angle_linear.1} parent=1 // pred_region
      %s250 = ssub.s32 128, 128
      %251 = vsyncadd [#allocation7], %s250
      %s253 = sshll.u32 [#allocation6], 4
      %s254 = int_to_ptr.vmem [resolvable:$true] %s253
      %256 = dma.vmem_to_hbm [thread:$0]  %s254, 128, %s4, [#allocation7]
    $region29: #{angle_linear.1} parent=1 // pred_fallthru
      _
    // Predicated region
    $region30: #{angle_linear.1} parent=1 // pred_check
      _
    $region31: #{angle_linear.1} parent=1 // pred_check_branch
      %258 = sbr.rel (0) target = $region33
    $region32: #{angle_linear.1} parent=1 // pred_region
      %259 = dma.done [#allocation5], 128
    $region33: #{angle_linear.1} parent=1 // pred_fallthru
      _
    // Predicated region
    $region34: #{angle_linear.1} parent=1 // pred_check
      _
    $region35: #{angle_linear.1} parent=1 // pred_check_branch
      %261 = sbr.rel (0) target = $region37
    $region36: #{angle_linear.1} parent=1 // pred_region
      %262 = dma.done [#allocation7], 128
    $region37: #{angle_linear.1} parent=1 // pred_fallthru
      _
    %263 = vsyncpa [#allocation5], 1
    %264 = vsyncpa [#allocation7], 1

</llo_original>
